<compile_context>
chip_gen: v5e
topology: v5e:2x2
jax: 0.10.0
libtpu: 0.0.40
codegen_flags: <defaults>
</compile_context>

<pallas_src>
import functools
import math

import jax
import jax.numpy as jnp
from jax import lax
from jax.experimental import pallas as pl
from jax.experimental.pallas import tpu as pltpu

# ---- module hyper-parameters (small, consistent with the PyTorch module) ----
BATCH = 2
SEQ = 8
D_MODEL = 32
NUM_HEADS = 4
DK = D_MODEL // NUM_HEADS          # = d_v
THETA = 10000.0

NEG_BIG = -1e30                    # finite mask value (avoids inf - inf -> NaN)
LANE = 128                         # TPU lane width (output padded to this)

VMEM_LIMIT_BYTES = 32 * 1024 * 1024          # explicit scoped-VMEM request
VMEM_BUDGET_BYTES = (3 * VMEM_LIMIT_BYTES) // 4   # leave headroom for Mosaic


# --------------------------- Pallas kernel ---------------------------------
def mhsa_kernel(x_ref, wqkv_ref, wo_ref, cos_ref, sin_ref, bias_ref, o_ref,
                *, num_heads, dk, d_model, mxu_dtype):
    """One grid step over a (R, D) block of tokens.

    R may contain several batch segments stacked along the row axis (the bias
    input is block-diagonal causal, so segments never attend to each other).
    The fused Q|K weight columns are in global split-half layout
    [Q_ev | K_ev | Q_od | K_od]; V and Wo keep the original layout.
    """
    D = d_model
    dk2 = dk // 2
    x = x_ref[...]                                       # (R, D), bf16

    # ---- fused QKV projection: one MXU push, f32 accumulation ---------------
    qkv = jnp.dot(x, wqkv_ref[...], preferred_element_type=jnp.float32)   # (R, 3D)
    qk = qkv[:, :2 * D]                                  # [Q_ev | K_ev | Q_od | K_od]
    v = qkv[:, 2 * D:]                                   # (R, D), original layout

    # ---- RoPE: one half-swap + one FMA over the fused Q|K slab --------------
    # rotate_half of the whole slab is a swap of its two D-wide halves
    # (== pltpu.roll(qk, D, axis=-1) when 2D is a multiple of 128 lanes);
    # the rotate_half sign lives in sin_ref, the 1/sqrt(dk) scale in wqkv.
    rot = jnp.concatenate([qk[:, D:], qk[:, :D]], axis=-1)
    qk = qk * cos_ref[...] + rot * sin_ref[...]          # f32 elementwise

    bias = bias_ref[...]                                 # (R, R) f32, precomputed

    # ---- per-head attention --------------------------------------------------
    # TODO(synk): production shapes -> flash tiling with dk >= 128 (or
    # head-batched contraction) so each MXU push is full-width; dk=8 here.
    dn = (((1,), (1,)), ((), ()))                        # contract last dims
    head_outs = []
    denoms = []
    for h in range(num_heads):
        e0 = h * dk2
        qh = jnp.concatenate([qk[:, e0:e0 + dk2],
                              qk[:, D + e0:D + e0 + dk2]], axis=-1)         # (R, dk)
        kh = jnp.concatenate([qk[:, D // 2 + e0:D // 2 + e0 + dk2],
                              qk[:, 3 * D // 2 + e0:3 * D // 2 + e0 + dk2]],
                             axis=-1)                                        # (R, dk)
        vh = v[:, h * dk:(h + 1) * dk]
        s = lax.dot_general(qh, kh, dn, preferred_element_type=jnp.float32) + bias
        m = jnp.max(s, axis=-1, keepdims=True)
        p = jnp.exp(s - m)                               # unnormalized probs, f32
        denoms.append(jnp.sum(p, axis=-1, keepdims=True))
        head_outs.append(jnp.dot(p.astype(mxu_dtype), vh.astype(mxu_dtype),
                                 preferred_element_type=jnp.float32))

    # ---- one EUP reciprocal for all heads + a Newton step (f32 accuracy) ----
    l = jnp.concatenate(denoms, axis=-1)                 # (R, H)
    r = pl.reciprocal(l, approx=True)
    r = r * (2.0 - l * r)                                # rel err ~ (2^-8)^2
    attn = jnp.concatenate(
        [head_outs[h] * r[:, h:h + 1] for h in range(num_heads)], axis=-1)   # (R, D)

    # ---- output projection into a lane-dense (R, 128) padded slab -----------
    o_ref[...] = jnp.dot(attn.astype(mxu_dtype), wo_ref[...],
                         preferred_element_type=jnp.float32)


# --------------------------- grid / VMEM sizing -------------------------------
def _block_vmem_bytes(rows, d_model, num_heads, mxu_bytes=2):
    """Rough per-grid-step VMEM estimate: double-buffered pipeline I/O plus the
    kernel's live f32 intermediates."""
    d = d_model
    n_pad = ((d + LANE - 1) // LANE) * LANE
    io = (rows * d * mxu_bytes            # x block
          + rows * n_pad * 4              # padded output block
          + rows * 2 * d * 4 * 2          # cos + sin
          + rows * rows * 4               # bias
          + d * 3 * d * mxu_bytes         # fused wqkv
          + d * n_pad * mxu_bytes)        # padded wo
    interm = (rows * 3 * d * 4 * 2        # qkv + rotated slab (f32)
              + num_heads * rows * rows * 4   # per-head scores / probs
              + rows * d * 4 * 2)         # head outputs + attn
    return 2 * io + interm                # x2: double buffering of I/O


def _choose_num_blocks(batch, seq, d_model, num_heads):
    """Hermetic grid choice (no device-kind sniffing):
      * fewest blocks (biggest tile) whose VMEM estimate fits the budget,
      * split into >= 2 parallel blocks (for multi-TensorCore chips) only when
        each block would still contain >= 128 lane-dense rows of work."""
    best = batch
    for n in range(1, batch + 1):
        if batch % n:
            continue
        rows = (batch * seq) // n
        if _block_vmem_bytes(rows, d_model, num_heads) <= VMEM_BUDGET_BYTES:
            best = n
            break
    if best == 1 and batch % 2 == 0 and (batch * seq) // 2 >= 128:
        best = 2
    return best


# --------------------------- wrapper ----------------------------------------
def multihead_self_attention(x, Wq, Wk, Wv, Wo, token_positions, *,
                             num_heads=NUM_HEADS, theta=THETA,
                             mxu_dtype=jnp.bfloat16):
    """x: (B, S, D).  W*: (out, in) as in the PyTorch Linear.  positions: (S,)."""
    B, S, D = x.shape
    H = num_heads
    dk = D // H
    dk2 = dk // 2
    n_pad = ((D + LANE - 1) // LANE) * LANE

    # ---- RoPE tables (global split-half layout, sign + layout folded in) ----
    pos = token_positions.astype(jnp.float32)[:, None]                # (S, 1)
    inv_freq = theta ** (-2.0 * jnp.arange(dk2, dtype=jnp.float32) / dk)
    ang = pos * inv_freq                                              # (S, dk2)
    cosE = jnp.tile(jnp.cos(ang), (1, H))                             # (S, D//2)
    sinE = jnp.tile(jnp.sin(ang), (1, H))
    cos2 = jnp.tile(cosE, (1, 4))                                     # (S, 2D)
    sin2 = jnp.concatenate([-sinE, -sinE, sinE, sinE], axis=-1)       # sign folded

    # ---- Q/K output-column permutation: global [all-evens | all-odds] -------
    heads = jnp.arange(H)[:, None] * dk
    E_perm = (heads + 2 * jnp.arange(dk2)[None, :]).reshape(-1)       # (D//2,)
    O_perm = (heads + 2 * jnp.arange(dk2)[None, :] + 1).reshape(-1)

    wq_t = Wq.T / math.sqrt(dk)          # fold 1/sqrt(dk) into Q weights
    wk_t = Wk.T
    wqkv = jnp.concatenate([wq_t[:, E_perm], wk_t[:, E_perm],
                            wq_t[:, O_perm], wk_t[:, O_perm], Wv.T], axis=1)  # (D, 3D)

    # zero-pad Wo columns so the output slab is lane-dense (unmasked stores)
    wo_pad = jnp.zeros((D, n_pad), jnp.float32).at[:, :D].set(Wo.T)

    # ---- grid selection (VMEM-byte driven, hermetic) -------------------------
    num_blocks = _choose_num_blocks(B, S, D, H)
    rows = (B * S) // num_blocks
    reps = rows // S

    cos_blk = jnp.tile(cos2, (reps, 1))                               # (rows, 2D)
    sin_blk = jnp.tile(sin2, (reps, 1))

    # block-diagonal causal bias, computed once here (not per grid step)
    r_idx = jnp.arange(rows)
    ok = ((r_idx[:, None] // S == r_idx[None, :] // S) &
          (r_idx[:, None] % S >= r_idx[None, :] % S))
    bias = jnp.where(ok, 0.0, NEG_BIG).astype(jnp.float32)            # (rows, rows)

    # bf16 MXU operands (halves weight/input DMA bytes); f32 accumulation in-kernel
    x2d = x.reshape(B * S, D).astype(mxu_dtype)
    wqkv = wqkv.astype(mxu_dtype)
    wo_pad = wo_pad.astype(mxu_dtype)

    kernel = functools.partial(mhsa_kernel, num_heads=H, dk=dk, d_model=D,
                               mxu_dtype=mxu_dtype)

    def full(shape):
        return pl.BlockSpec(shape, lambda i: (0,) * len(shape))

    out = pl.pallas_call(
        kernel,
        out_shape=jax.ShapeDtypeStruct((B * S, n_pad), jnp.float32),
        grid_spec=pltpu.PrefetchScalarGridSpec(
            num_scalar_prefetch=0,
            grid=(num_blocks,),
            in_specs=[
                pl.BlockSpec((rows, D), lambda i: (i, 0)),   # x
                full((D, 3 * D)),                            # fused wqkv (permuted Q/K)
                full((D, n_pad)),                            # Wo^T, zero-padded columns
                full((rows, 2 * D)),                         # cos (split-half layout)
                full((rows, 2 * D)),                         # sin (sign folded in)
                full((rows, rows)),                          # block-diag causal bias
            ],
            out_specs=pl.BlockSpec((rows, n_pad), lambda i: (i, 0)),
        ),
        compiler_params=pltpu.CompilerParams(
            dimension_semantics=("parallel",),
            vmem_limit_bytes=VMEM_LIMIT_BYTES),
    )(x2d, wqkv, wo_pad, cos_blk, sin_blk, bias)

    return out[:, :D].reshape(B, S, D)


# --------------------------- pure-JAX reference ------------------------------
def reference(x, Wq, Wk, Wv, Wo, token_positions):
    B, S, D = x.shape
    q = jnp.einsum('...i,ji->...j', x, Wq)
    k = jnp.einsum('...i,ji->...j', x, Wk)
    v = jnp.einsum('...i,ji->...j', x, Wv)
    q = q.reshape(B, S, NUM_HEADS, DK).transpose(0, 2, 1, 3)
    k = k.reshape(B, S, NUM_HEADS, DK).transpose(0, 2, 1, 3)
    v = v.reshape(B, S, NUM_HEADS, DK).transpose(0, 2, 1, 3)

    freqs = jnp.arange(DK // 2, dtype=jnp.float32)
    tv = token_positions[:, None].astype(jnp.float32) / (THETA ** (2.0 * freqs / DK))
    cos, sin = jnp.cos(tv), jnp.sin(tv)

    def rope(t):
        x1, x2 = t[..., 0::2], t[..., 1::2]
        out = jnp.zeros_like(t)
        out = out.at[..., 0::2].set(x1 * cos - x2 * sin)
        out = out.at[..., 1::2].set(x1 * sin + x2 * cos)
        return out

    q, k = rope(q), rope(k)
    s = jnp.einsum('bhqd,bhkd->bhqk', q, k) / math.sqrt(DK)
    mask = jnp.tril(jnp.ones((S, S), bool))
    s = jnp.where(mask, s, -jnp.inf)
    p = jax.nn.softmax(s, axis=-1)
    o = jnp.einsum('bhqk,bhkd->bhqd', p, v)
    o = o.transpose(0, 2, 1, 3).reshape(B, S, D)
    return jnp.einsum('...i,ji->...j', o, Wo)


# --------------------------- main --------------------------------------------
if __name__ == "__main__":
    key = jax.random.PRNGKey(0)
    kx, kq, kk, kv, ko = jax.random.split(key, 5)

    sigma = math.sqrt(2.0 / (D_MODEL + D_MODEL))
    trunc = lambda k: sigma * jax.random.truncated_normal(k, -3.0, 3.0,
                                                          (D_MODEL, D_MODEL), jnp.float32)
    Wq, Wk, Wv, Wo = trunc(kq), trunc(kk), trunc(kv), trunc(ko)

    x = jax.random.normal(kx, (BATCH, SEQ, D_MODEL), jnp.float32)
    token_positions = jnp.arange(SEQ, dtype=jnp.int32)

    out = multihead_self_attention(x, Wq, Wk, Wv, Wo, token_positions)
    out = jax.block_until_ready(out)

    ref = reference(x, Wq, Wk, Wv, Wo, token_positions)
    assert out.shape == (BATCH, SEQ, D_MODEL)
    # Tolerance sized for bf16 MXU operands (~2^-9 relative rounding per operand
    # through three matmul stages); softmax / bias / RoPE math and accumulation
    # are f32 and the softmax reciprocal is Newton-corrected.
    err = float(jnp.max(jnp.abs(out - ref)))
    assert jnp.allclose(out, ref, atol=5e-2, rtol=5e-2), err
    print("KERNEL_OK")
</pallas_src>

<mosaic_0001>
module attributes {stable_mosaic.version = 11 : i64} {
  func.func @mhsa_kernel(%arg0: i32, %arg1: memref<16x32xbf16, #tpu.memory_space<vmem>>, %arg2: memref<32x96xbf16, #tpu.memory_space<vmem>>, %arg3: memref<32x128xbf16, #tpu.memory_space<vmem>>, %arg4: memref<16x64xf32, #tpu.memory_space<vmem>>, %arg5: memref<16x64xf32, #tpu.memory_space<vmem>>, %arg6: memref<16x16xf32, #tpu.memory_space<vmem>>, %arg7: memref<16x128xf32, #tpu.memory_space<vmem>>) attributes {dimension_semantics = [#tpu.dimension_semantics<parallel>], iteration_bounds = array<i64: 1>, scalar_prefetch = 0 : i64, scratch_operands = 0 : i64, tpu.core_type = #tpu.core_type<tc>, window_params = [{transform_indices = @transform_0, window_bounds = array<i64: 16, 32>}, {pipeline_mode = #tpu.pipeline_mode<synchronous>, transform_indices = @transform_1, window_bounds = array<i64: 32, 96>}, {pipeline_mode = #tpu.pipeline_mode<synchronous>, transform_indices = @transform_2, window_bounds = array<i64: 32, 128>}, {pipeline_mode = #tpu.pipeline_mode<synchronous>, transform_indices = @transform_3, window_bounds = array<i64: 16, 64>}, {pipeline_mode = #tpu.pipeline_mode<synchronous>, transform_indices = @transform_4, window_bounds = array<i64: 16, 64>}, {pipeline_mode = #tpu.pipeline_mode<synchronous>, transform_indices = @transform_5, window_bounds = array<i64: 16, 16>}, {transform_indices = @transform_6, window_bounds = array<i64: 16, 128>}]} {
    %c0 = arith.constant 0 : index
    %c0_0 = arith.constant 0 : index
    %0 = vector.load %arg1[%c0, %c0_0] : memref<16x32xbf16, #tpu.memory_space<vmem>>, vector<16x32xbf16>
    %c0_1 = arith.constant 0 : index
    %c0_2 = arith.constant 0 : index
    %1 = vector.load %arg2[%c0_1, %c0_2] : memref<32x96xbf16, #tpu.memory_space<vmem>>, vector<32x96xbf16>
    %cst = arith.constant dense<0.000000e+00> : vector<16x96xf32>
    %2 = tpu.matmul %0, %1, %cst {dimension_numbers = #tpu.dot_dimension_numbers<[1], [0], [0], [1], [0, 0, 1, 1], [], []>} : vector<16x32xbf16>, vector<32x96xbf16>, vector<16x96xf32> -> vector<16x96xf32>
    %3 = vector.extract_strided_slice %2 {offsets = [0, 0], sizes = [16, 64], strides = [1, 1]} : vector<16x96xf32> to vector<16x64xf32>
    %4 = vector.extract_strided_slice %2 {offsets = [0, 64], sizes = [16, 32], strides = [1, 1]} : vector<16x96xf32> to vector<16x32xf32>
    %5 = vector.extract_strided_slice %3 {offsets = [0, 32], sizes = [16, 32], strides = [1, 1]} : vector<16x64xf32> to vector<16x32xf32>
    %6 = vector.extract_strided_slice %3 {offsets = [0, 0], sizes = [16, 32], strides = [1, 1]} : vector<16x64xf32> to vector<16x32xf32>
    %7 = tpu.concatenate %5, %6 in 1 : vector<16x32xf32>, vector<16x32xf32> -> vector<16x64xf32>
    %c0_3 = arith.constant 0 : index
    %c0_4 = arith.constant 0 : index
    %8 = vector.load %arg4[%c0_3, %c0_4] : memref<16x64xf32, #tpu.memory_space<vmem>>, vector<16x64xf32>
    %9 = arith.mulf %3, %8 : vector<16x64xf32>
    %c0_5 = arith.constant 0 : index
    %c0_6 = arith.constant 0 : index
    %10 = vector.load %arg5[%c0_5, %c0_6] : memref<16x64xf32, #tpu.memory_space<vmem>>, vector<16x64xf32>
    %11 = arith.mulf %7, %10 : vector<16x64xf32>
    %12 = arith.addf %9, %11 : vector<16x64xf32>
    %c0_7 = arith.constant 0 : index
    %c0_8 = arith.constant 0 : index
    %13 = vector.load %arg6[%c0_7, %c0_8] : memref<16x16xf32, #tpu.memory_space<vmem>>, vector<16x16xf32>
    %14 = vector.extract_strided_slice %12 {offsets = [0, 0], sizes = [16, 4], strides = [1, 1]} : vector<16x64xf32> to vector<16x4xf32>
    %15 = vector.extract_strided_slice %12 {offsets = [0, 32], sizes = [16, 4], strides = [1, 1]} : vector<16x64xf32> to vector<16x4xf32>
    %16 = tpu.concatenate %14, %15 in 1 : vector<16x4xf32>, vector<16x4xf32> -> vector<16x8xf32>
    %17 = vector.extract_strided_slice %12 {offsets = [0, 16], sizes = [16, 4], strides = [1, 1]} : vector<16x64xf32> to vector<16x4xf32>
    %18 = vector.extract_strided_slice %12 {offsets = [0, 48], sizes = [16, 4], strides = [1, 1]} : vector<16x64xf32> to vector<16x4xf32>
    %19 = tpu.concatenate %17, %18 in 1 : vector<16x4xf32>, vector<16x4xf32> -> vector<16x8xf32>
    %20 = vector.extract_strided_slice %4 {offsets = [0, 0], sizes = [16, 8], strides = [1, 1]} : vector<16x32xf32> to vector<16x8xf32>
    %cst_9 = arith.constant dense<0.000000e+00> : vector<16x16xf32>
    %21 = tpu.matmul %16, %19, %cst_9 {dimension_numbers = #tpu.dot_dimension_numbers<[1], [1], [0], [0], [0, 0, 1, 0], [], []>} : vector<16x8xf32>, vector<16x8xf32>, vector<16x16xf32> -> vector<16x16xf32>
    %22 = arith.addf %21, %13 : vector<16x16xf32>
    %cst_10 = arith.constant dense<0xFF800000> : vector<16xf32>
    %23 = vector.multi_reduction <maximumf>, %22, %cst_10 [1] : vector<16x16xf32> to vector<16xf32>
    %24 = vector.shape_cast %23 : vector<16xf32> to vector<16x1xf32>
    %25 = vector.broadcast %24 : vector<16x1xf32> to vector<16x16xf32>
    %26 = arith.subf %22, %25 : vector<16x16xf32>
    %27 = math.exp %26 : vector<16x16xf32>
    %cst_11 = arith.constant dense<0.000000e+00> : vector<16xf32>
    %28 = vector.multi_reduction <add>, %27, %cst_11 [1] : vector<16x16xf32> to vector<16xf32>
    %29 = vector.shape_cast %28 : vector<16xf32> to vector<16x1xf32>
    %30 = arith.truncf %27 : vector<16x16xf32> to vector<16x16xbf16>
    %31 = arith.truncf %20 : vector<16x8xf32> to vector<16x8xbf16>
    %cst_12 = arith.constant dense<0.000000e+00> : vector<16x8xf32>
    %32 = tpu.matmul %30, %31, %cst_12 {dimension_numbers = #tpu.dot_dimension_numbers<[1], [0], [0], [1], [0, 0, 1, 1], [], []>} : vector<16x16xbf16>, vector<16x8xbf16>, vector<16x8xf32> -> vector<16x8xf32>
    %33 = vector.extract_strided_slice %12 {offsets = [0, 4], sizes = [16, 4], strides = [1, 1]} : vector<16x64xf32> to vector<16x4xf32>
    %34 = vector.extract_strided_slice %12 {offsets = [0, 36], sizes = [16, 4], strides = [1, 1]} : vector<16x64xf32> to vector<16x4xf32>
    %35 = tpu.concatenate %33, %34 in 1 : vector<16x4xf32>, vector<16x4xf32> -> vector<16x8xf32>
    %36 = vector.extract_strided_slice %12 {offsets = [0, 20], sizes = [16, 4], strides = [1, 1]} : vector<16x64xf32> to vector<16x4xf32>
    %37 = vector.extract_strided_slice %12 {offsets = [0, 52], sizes = [16, 4], strides = [1, 1]} : vector<16x64xf32> to vector<16x4xf32>
    %38 = tpu.concatenate %36, %37 in 1 : vector<16x4xf32>, vector<16x4xf32> -> vector<16x8xf32>
    %39 = vector.extract_strided_slice %4 {offsets = [0, 8], sizes = [16, 8], strides = [1, 1]} : vector<16x32xf32> to vector<16x8xf32>
    %cst_13 = arith.constant dense<0.000000e+00> : vector<16x16xf32>
    %40 = tpu.matmul %35, %38, %cst_13 {dimension_numbers = #tpu.dot_dimension_numbers<[1], [1], [0], [0], [0, 0, 1, 0], [], []>} : vector<16x8xf32>, vector<16x8xf32>, vector<16x16xf32> -> vector<16x16xf32>
    %41 = arith.addf %40, %13 : vector<16x16xf32>
    %cst_14 = arith.constant dense<0xFF800000> : vector<16xf32>
    %42 = vector.multi_reduction <maximumf>, %41, %cst_14 [1] : vector<16x16xf32> to vector<16xf32>
    %43 = vector.shape_cast %42 : vector<16xf32> to vector<16x1xf32>
    %44 = vector.broadcast %43 : vector<16x1xf32> to vector<16x16xf32>
    %45 = arith.subf %41, %44 : vector<16x16xf32>
    %46 = math.exp %45 : vector<16x16xf32>
    %cst_15 = arith.constant dense<0.000000e+00> : vector<16xf32>
    %47 = vector.multi_reduction <add>, %46, %cst_15 [1] : vector<16x16xf32> to vector<16xf32>
    %48 = vector.shape_cast %47 : vector<16xf32> to vector<16x1xf32>
    %49 = arith.truncf %46 : vector<16x16xf32> to vector<16x16xbf16>
    %50 = arith.truncf %39 : vector<16x8xf32> to vector<16x8xbf16>
    %cst_16 = arith.constant dense<0.000000e+00> : vector<16x8xf32>
    %51 = tpu.matmul %49, %50, %cst_16 {dimension_numbers = #tpu.dot_dimension_numbers<[1], [0], [0], [1], [0, 0, 1, 1], [], []>} : vector<16x16xbf16>, vector<16x8xbf16>, vector<16x8xf32> -> vector<16x8xf32>
    %52 = vector.extract_strided_slice %12 {offsets = [0, 8], sizes = [16, 4], strides = [1, 1]} : vector<16x64xf32> to vector<16x4xf32>
    %53 = vector.extract_strided_slice %12 {offsets = [0, 40], sizes = [16, 4], strides = [1, 1]} : vector<16x64xf32> to vector<16x4xf32>
    %54 = tpu.concatenate %52, %53 in 1 : vector<16x4xf32>, vector<16x4xf32> -> vector<16x8xf32>
    %55 = vector.extract_strided_slice %12 {offsets = [0, 24], sizes = [16, 4], strides = [1, 1]} : vector<16x64xf32> to vector<16x4xf32>
    %56 = vector.extract_strided_slice %12 {offsets = [0, 56], sizes = [16, 4], strides = [1, 1]} : vector<16x64xf32> to vector<16x4xf32>
    %57 = tpu.concatenate %55, %56 in 1 : vector<16x4xf32>, vector<16x4xf32> -> vector<16x8xf32>
    %58 = vector.extract_strided_slice %4 {offsets = [0, 16], sizes = [16, 8], strides = [1, 1]} : vector<16x32xf32> to vector<16x8xf32>
    %cst_17 = arith.constant dense<0.000000e+00> : vector<16x16xf32>
    %59 = tpu.matmul %54, %57, %cst_17 {dimension_numbers = #tpu.dot_dimension_numbers<[1], [1], [0], [0], [0, 0, 1, 0], [], []>} : vector<16x8xf32>, vector<16x8xf32>, vector<16x16xf32> -> vector<16x16xf32>
    %60 = arith.addf %59, %13 : vector<16x16xf32>
    %cst_18 = arith.constant dense<0xFF800000> : vector<16xf32>
    %61 = vector.multi_reduction <maximumf>, %60, %cst_18 [1] : vector<16x16xf32> to vector<16xf32>
    %62 = vector.shape_cast %61 : vector<16xf32> to vector<16x1xf32>
    %63 = vector.broadcast %62 : vector<16x1xf32> to vector<16x16xf32>
    %64 = arith.subf %60, %63 : vector<16x16xf32>
    %65 = math.exp %64 : vector<16x16xf32>
    %cst_19 = arith.constant dense<0.000000e+00> : vector<16xf32>
    %66 = vector.multi_reduction <add>, %65, %cst_19 [1] : vector<16x16xf32> to vector<16xf32>
    %67 = vector.shape_cast %66 : vector<16xf32> to vector<16x1xf32>
    %68 = arith.truncf %65 : vector<16x16xf32> to vector<16x16xbf16>
    %69 = arith.truncf %58 : vector<16x8xf32> to vector<16x8xbf16>
    %cst_20 = arith.constant dense<0.000000e+00> : vector<16x8xf32>
    %70 = tpu.matmul %68, %69, %cst_20 {dimension_numbers = #tpu.dot_dimension_numbers<[1], [0], [0], [1], [0, 0, 1, 1], [], []>} : vector<16x16xbf16>, vector<16x8xbf16>, vector<16x8xf32> -> vector<16x8xf32>
    %71 = vector.extract_strided_slice %12 {offsets = [0, 12], sizes = [16, 4], strides = [1, 1]} : vector<16x64xf32> to vector<16x4xf32>
    %72 = vector.extract_strided_slice %12 {offsets = [0, 44], sizes = [16, 4], strides = [1, 1]} : vector<16x64xf32> to vector<16x4xf32>
    %73 = tpu.concatenate %71, %72 in 1 : vector<16x4xf32>, vector<16x4xf32> -> vector<16x8xf32>
    %74 = vector.extract_strided_slice %12 {offsets = [0, 28], sizes = [16, 4], strides = [1, 1]} : vector<16x64xf32> to vector<16x4xf32>
    %75 = vector.extract_strided_slice %12 {offsets = [0, 60], sizes = [16, 4], strides = [1, 1]} : vector<16x64xf32> to vector<16x4xf32>
    %76 = tpu.concatenate %74, %75 in 1 : vector<16x4xf32>, vector<16x4xf32> -> vector<16x8xf32>
    %77 = vector.extract_strided_slice %4 {offsets = [0, 24], sizes = [16, 8], strides = [1, 1]} : vector<16x32xf32> to vector<16x8xf32>
    %cst_21 = arith.constant dense<0.000000e+00> : vector<16x16xf32>
    %78 = tpu.matmul %73, %76, %cst_21 {dimension_numbers = #tpu.dot_dimension_numbers<[1], [1], [0], [0], [0, 0, 1, 0], [], []>} : vector<16x8xf32>, vector<16x8xf32>, vector<16x16xf32> -> vector<16x16xf32>
    %79 = arith.addf %78, %13 : vector<16x16xf32>
    %cst_22 = arith.constant dense<0xFF800000> : vector<16xf32>
    %80 = vector.multi_reduction <maximumf>, %79, %cst_22 [1] : vector<16x16xf32> to vector<16xf32>
    %81 = vector.shape_cast %80 : vector<16xf32> to vector<16x1xf32>
    %82 = vector.broadcast %81 : vector<16x1xf32> to vector<16x16xf32>
    %83 = arith.subf %79, %82 : vector<16x16xf32>
    %84 = math.exp %83 : vector<16x16xf32>
    %cst_23 = arith.constant dense<0.000000e+00> : vector<16xf32>
    %85 = vector.multi_reduction <add>, %84, %cst_23 [1] : vector<16x16xf32> to vector<16xf32>
    %86 = vector.shape_cast %85 : vector<16xf32> to vector<16x1xf32>
    %87 = arith.truncf %84 : vector<16x16xf32> to vector<16x16xbf16>
    %88 = arith.truncf %77 : vector<16x8xf32> to vector<16x8xbf16>
    %cst_24 = arith.constant dense<0.000000e+00> : vector<16x8xf32>
    %89 = tpu.matmul %87, %88, %cst_24 {dimension_numbers = #tpu.dot_dimension_numbers<[1], [0], [0], [1], [0, 0, 1, 1], [], []>} : vector<16x16xbf16>, vector<16x8xbf16>, vector<16x8xf32> -> vector<16x8xf32>
    %90 = tpu.concatenate %29, %48, %67, %86 in 1 : vector<16x1xf32>, vector<16x1xf32>, vector<16x1xf32>, vector<16x1xf32> -> vector<16x4xf32>
    %91 = tpu.reciprocal %90 {approx = true} : vector<16x4xf32> -> vector<16x4xf32>
    %92 = arith.mulf %90, %91 : vector<16x4xf32>
    %cst_25 = arith.constant 2.000000e+00 : f32
    %93 = vector.broadcast %cst_25 : f32 to vector<16x4xf32>
    %94 = arith.subf %93, %92 : vector<16x4xf32>
    %95 = arith.mulf %91, %94 : vector<16x4xf32>
    %96 = vector.extract_strided_slice %95 {offsets = [0, 0], sizes = [16, 1], strides = [1, 1]} : vector<16x4xf32> to vector<16x1xf32>
    %97 = vector.broadcast %96 : vector<16x1xf32> to vector<16x8xf32>
    %98 = arith.mulf %32, %97 : vector<16x8xf32>
    %99 = vector.extract_strided_slice %95 {offsets = [0, 1], sizes = [16, 1], strides = [1, 1]} : vector<16x4xf32> to vector<16x1xf32>
    %100 = vector.broadcast %99 : vector<16x1xf32> to vector<16x8xf32>
    %101 = arith.mulf %51, %100 : vector<16x8xf32>
    %102 = vector.extract_strided_slice %95 {offsets = [0, 2], sizes = [16, 1], strides = [1, 1]} : vector<16x4xf32> to vector<16x1xf32>
    %103 = vector.broadcast %102 : vector<16x1xf32> to vector<16x8xf32>
    %104 = arith.mulf %70, %103 : vector<16x8xf32>
    %105 = vector.extract_strided_slice %95 {offsets = [0, 3], sizes = [16, 1], strides = [1, 1]} : vector<16x4xf32> to vector<16x1xf32>
    %106 = vector.broadcast %105 : vector<16x1xf32> to vector<16x8xf32>
    %107 = arith.mulf %89, %106 : vector<16x8xf32>
    %108 = tpu.concatenate %98, %101, %104, %107 in 1 : vector<16x8xf32>, vector<16x8xf32>, vector<16x8xf32>, vector<16x8xf32> -> vector<16x32xf32>
    %109 = arith.truncf %108 : vector<16x32xf32> to vector<16x32xbf16>
    %c0_26 = arith.constant 0 : index
    %c0_27 = arith.constant 0 : index
    %110 = vector.load %arg3[%c0_26, %c0_27] : memref<32x128xbf16, #tpu.memory_space<vmem>>, vector<32x128xbf16>
    %cst_28 = arith.constant dense<0.000000e+00> : vector<16x128xf32>
    %111 = tpu.matmul %109, %110, %cst_28 {dimension_numbers = #tpu.dot_dimension_numbers<[1], [0], [0], [1], [0, 0, 1, 1], [], []>} : vector<16x32xbf16>, vector<32x128xbf16>, vector<16x128xf32> -> vector<16x128xf32>
    %c0_29 = arith.constant 0 : index
    %c0_30 = arith.constant 0 : index
    %112 = vector.load %arg7[%c0_29, %c0_30] : memref<16x128xf32, #tpu.memory_space<vmem>>, vector<16x128xf32>
    tpu.vector_store %arg7[%c0_29, %c0_30], %111 {strides = array<i32>} : memref<16x128xf32, #tpu.memory_space<vmem>>, vector<16x128xf32>,
    return
  }
  func.func @transform_0(%arg0: i32) -> (i32, i32) {
    %c0_i32 = arith.constant 0 : i32
    %c0_i32_0 = arith.constant 0 : i32
    return %arg0, %c0_i32 : i32, i32
  }
  func.func @transform_1(%arg0: i32) -> (i32, i32) {
    %c0_i32 = arith.constant 0 : i32
    %c0_i32_0 = arith.constant 0 : i32
    %c0_i32_1 = arith.constant 0 : i32
    return %c0_i32, %c0_i32_0 : i32, i32
  }
  func.func @transform_2(%arg0: i32) -> (i32, i32) {
    %c0_i32 = arith.constant 0 : i32
    %c0_i32_0 = arith.constant 0 : i32
    %c0_i32_1 = arith.constant 0 : i32
    return %c0_i32, %c0_i32_0 : i32, i32
  }
  func.func @transform_3(%arg0: i32) -> (i32, i32) {
    %c0_i32 = arith.constant 0 : i32
    %c0_i32_0 = arith.constant 0 : i32
    %c0_i32_1 = arith.constant 0 : i32
    return %c0_i32, %c0_i32_0 : i32, i32
  }
  func.func @transform_4(%arg0: i32) -> (i32, i32) {
    %c0_i32 = arith.constant 0 : i32
    %c0_i32_0 = arith.constant 0 : i32
    %c0_i32_1 = arith.constant 0 : i32
    return %c0_i32, %c0_i32_0 : i32, i32
  }
  func.func @transform_5(%arg0: i32) -> (i32, i32) {
    %c0_i32 = arith.constant 0 : i32
    %c0_i32_0 = arith.constant 0 : i32
    %c0_i32_1 = arith.constant 0 : i32
    return %c0_i32, %c0_i32_0 : i32, i32
  }
  func.func @transform_6(%arg0: i32) -> (i32, i32) {
    %c0_i32 = arith.constant 0 : i32
    %c0_i32_0 = arith.constant 0 : i32
    return %arg0, %c0_i32 : i32, i32
  }
}

</mosaic_0001>

<llo_original>
// kernel: tpu_custom_call.1
$region0: #{tpu_custom_call.1}
  #allocation0 [shape = 'u32[]', space=smem, size = 0x4, offset = 0x4, fixed_abs, tag = 'smem constant byte address 0x4 - core index']
  #allocation1 [shape = 'u32[72,128]{1,0:T(1,128)}', space=vmem, size = 0x9000, scoped, tag = 'internal scratch']
  %s0 = inlined_call_operand.hbm [shape: bf16[16,32], index: 0, kind: input, shape index: {}]
  %s1 = inlined_call_operand.hbm [shape: bf16[32,96], index: 1, kind: input, shape index: {}]
  %s2 = inlined_call_operand.hbm [shape: bf16[32,128], index: 2, kind: input, shape index: {}]
  %s3 = inlined_call_operand.hbm [shape: f32[16,64], index: 3, kind: input, shape index: {}]
  %s4 = inlined_call_operand.hbm [shape: f32[16,64], index: 4, kind: input, shape index: {}]
  %s5 = inlined_call_operand.hbm [shape: f32[16,16], index: 5, kind: input, shape index: {}]
  %s6 = inlined_call_operand.hbm [shape: f32[16,128], index: 6, kind: output, shape index: {}]
  %s7 = sld [smem:[#allocation0]]
  $region58: #{tpu_custom_call.1} parent=0
    _
  %s9 = ssub.s32 1, %s7
  %s10 = scalar_select 0, %s9, %s7
  $region1: #{tpu_custom_call.1} parent=0
    #allocation2 [shape = 'u8[4096]{0}', space=vmem, size = 0x1000, scoped, tag = 'input window, operand 0, single buffered']
    #allocation3 [shape = 's32[1]{0}', space=sflag, size = 0x4, scoped, tag = 'scoped memory for tpu_custom_call.1']
    #allocation4 [shape = 's32[1]{0}', space=sflag, size = 0x4, scoped, tag = 'scoped memory for tpu_custom_call.1']
    #allocation5 [shape = 'u8[8192]{0}', space=vmem, size = 0x2000, scoped, tag = 'input window, operand 1, single buffered']
    #allocation6 [shape = 's32[1]{0}', space=sflag, size = 0x4, scoped, tag = 'scoped memory for tpu_custom_call.1']
    #allocation7 [shape = 'u8[8192]{0}', space=vmem, size = 0x2000, scoped, tag = 'input window, operand 2, single buffered']
    #allocation8 [shape = 'u8[8192]{0}', space=vmem, size = 0x2000, scoped, tag = 'input window, operand 3, single buffered']
    #allocation9 [shape = 's32[1]{0}', space=sflag, size = 0x4, scoped, tag = 'scoped memory for tpu_custom_call.1']
    #allocation10 [shape = 'u8[8192]{0}', space=vmem, size = 0x2000, scoped, tag = 'input window, operand 4, single buffered']
    #allocation11 [shape = 'u8[8192]{0}', space=vmem, size = 0x2000, scoped, tag = 'input window, operand 5, single buffered']
    #allocation12 [shape = 's32[1]{0}', space=sflag, size = 0x4, scoped, tag = 'scoped memory for tpu_custom_call.1']
    #allocation13 [shape = 'u8[8192]{0}', space=vmem, size = 0x2000, scoped, tag = 'output window, operand 0, single buffered']
    %11 = vsyncpa [#allocation3], 0
    %12 = vsyncpa [#allocation6], 0
    %13 = vsyncpa [#allocation9], 0
    %14 = vsyncpa [#allocation12], 0
    %15 = vsyncpa [#allocation4], 0
    // Predicated region
    $region2: #{tpu_custom_call.1} parent=1 // pred_check
      _
    $region3: #{tpu_custom_call.1} parent=1 // pred_check_branch
      %17 = sbr.rel (0) target = $region5
    $region4: #{tpu_custom_call.1} parent=1 // pred_region
      %19 = vsyncadd [#allocation3], 0
      %s20 = sshll.u32 %s0, 4
      %s21 = int_to_ptr.hbm [resolvable:$true] %s20
      %s22 = sshll.u32 [#allocation2], 4
      %s23 = int_to_ptr.vmem [resolvable:$true] %s22
      %28 = dma.hbm_to_vmem [thread:$0]  %s21, 128, %s23, [#allocation3], 64, 64, 4
    $region5: #{tpu_custom_call.1} parent=1 // pred_fallthru
      _
    // Predicated region
    $region6: #{tpu_custom_call.1} parent=1 // pred_check
      _
    $region7: #{tpu_custom_call.1} parent=1 // pred_check_branch
      %30 = sbr.rel (0) target = $region9
    $region8: #{tpu_custom_call.1} parent=1 // pred_region
      %32 = vsyncadd [#allocation6], 0
      %s33 = sshll.u32 %s1, 4
      %s34 = int_to_ptr.hbm [resolvable:$true] %s33
      %s35 = sshll.u32 [#allocation5], 4
      %s36 = int_to_ptr.vmem [resolvable:$true] %s35
      %41 = dma.hbm_to_vmem [thread:$0]  %s34, 256, %s36, [#allocation6], 64, 64, 4
    $region9: #{tpu_custom_call.1} parent=1 // pred_fallthru
      _
    // Predicated region
    $region10: #{tpu_custom_call.1} parent=1 // pred_check
      _
    $region11: #{tpu_custom_call.1} parent=1 // pred_check_branch
      %43 = sbr.rel (0) target = $region13
    $region12: #{tpu_custom_call.1} parent=1 // pred_region
      %45 = vsyncadd [#allocation6], 0
      %s46 = sshll.u32 %s2, 4
      %s47 = int_to_ptr.hbm [resolvable:$true] %s46
      %s48 = sshll.u32 [#allocation7], 4
      %s49 = int_to_ptr.vmem [resolvable:$true] %s48
      %54 = dma.hbm_to_vmem [thread:$0]  %s47, 256, %s49, [#allocation6], 64, 64, 4
    $region13: #{tpu_custom_call.1} parent=1 // pred_fallthru
      _
    // Predicated region
    $region14: #{tpu_custom_call.1} parent=1 // pred_check
      _
    $region15: #{tpu_custom_call.1} parent=1 // pred_check_branch
      %56 = sbr.rel (0) target = $region17
    $region16: #{tpu_custom_call.1} parent=1 // pred_region
      %58 = vsyncadd [#allocation9], 0
      %s59 = sshll.u32 %s3, 4
      %s60 = int_to_ptr.hbm [resolvable:$true] %s59
      %s61 = sshll.u32 [#allocation8], 4
      %s62 = int_to_ptr.vmem [resolvable:$true] %s61
      %67 = dma.hbm_to_vmem [thread:$0]  %s60, 256, %s62, [#allocation9], 128, 128, 8
    $region17: #{tpu_custom_call.1} parent=1 // pred_fallthru
      _
    // Predicated region
    $region18: #{tpu_custom_call.1} parent=1 // pred_check
      _
    $region19: #{tpu_custom_call.1} parent=1 // pred_check_branch
      %69 = sbr.rel (0) target = $region21
    $region20: #{tpu_custom_call.1} parent=1 // pred_region
      %71 = vsyncadd [#allocation9], 0
      %s72 = sshll.u32 %s4, 4
      %s73 = int_to_ptr.hbm [resolvable:$true] %s72
      %s74 = sshll.u32 [#allocation10], 4
      %s75 = int_to_ptr.vmem [resolvable:$true] %s74
      %80 = dma.hbm_to_vmem [thread:$0]  %s73, 256, %s75, [#allocation9], 128, 128, 8
    $region21: #{tpu_custom_call.1} parent=1 // pred_fallthru
      _
    // Predicated region
    $region22: #{tpu_custom_call.1} parent=1 // pred_check
      _
    $region23: #{tpu_custom_call.1} parent=1 // pred_check_branch
      %82 = sbr.rel (0) target = $region25
    $region24: #{tpu_custom_call.1} parent=1 // pred_region
      %84 = vsyncadd [#allocation12], 0
      %s85 = sshll.u32 %s5, 4
      %s86 = int_to_ptr.hbm [resolvable:$true] %s85
      %s87 = sshll.u32 [#allocation11], 4
      %s88 = int_to_ptr.vmem [resolvable:$true] %s87
      %93 = dma.hbm_to_vmem [thread:$0]  %s86, 256, %s88, [#allocation12], 128, 128, 8
    $region25: #{tpu_custom_call.1} parent=1 // pred_fallthru
      _
    // Predicated region
    $region26: #{tpu_custom_call.1} parent=1 // pred_check
      _
    $region27: #{tpu_custom_call.1} parent=1 // pred_check_branch
      %95 = sbr.rel (0) target = $region29
    $region28: #{tpu_custom_call.1} parent=1 // pred_region
      %97 = dma.done [#allocation3], 128
    $region29: #{tpu_custom_call.1} parent=1 // pred_fallthru
      _
    // Predicated region
    $region30: #{tpu_custom_call.1} parent=1 // pred_check
      _
    $region31: #{tpu_custom_call.1} parent=1 // pred_check_branch
      %99 = sbr.rel (0) target = $region33
    $region32: #{tpu_custom_call.1} parent=1 // pred_region
      %101 = dma.done [#allocation6], 256
    $region33: #{tpu_custom_call.1} parent=1 // pred_fallthru
      _
    // Predicated region
    $region34: #{tpu_custom_call.1} parent=1 // pred_check
      _
    $region35: #{tpu_custom_call.1} parent=1 // pred_check_branch
      %103 = sbr.rel (0) target = $region37
    $region36: #{tpu_custom_call.1} parent=1 // pred_region
      %105 = dma.done [#allocation6], 256
    $region37: #{tpu_custom_call.1} parent=1 // pred_fallthru
      _
    // Predicated region
    $region38: #{tpu_custom_call.1} parent=1 // pred_check
      _
    $region39: #{tpu_custom_call.1} parent=1 // pred_check_branch
      %107 = sbr.rel (0) target = $region41
    $region40: #{tpu_custom_call.1} parent=1 // pred_region
      %109 = dma.done [#allocation9], 256
    $region41: #{tpu_custom_call.1} parent=1 // pred_fallthru
      _
    // Predicated region
    $region42: #{tpu_custom_call.1} parent=1 // pred_check
      _
    $region43: #{tpu_custom_call.1} parent=1 // pred_check_branch
      %111 = sbr.rel (0) target = $region45
    $region44: #{tpu_custom_call.1} parent=1 // pred_region
      %113 = dma.done [#allocation9], 256
    $region45: #{tpu_custom_call.1} parent=1 // pred_fallthru
      _
    // Predicated region
    $region46: #{tpu_custom_call.1} parent=1 // pred_check
      _
    $region47: #{tpu_custom_call.1} parent=1 // pred_check_branch
      %115 = sbr.rel (0) target = $region49
    $region48: #{tpu_custom_call.1} parent=1 // pred_region
      %117 = dma.done [#allocation12], 256
    $region49: #{tpu_custom_call.1} parent=1 // pred_fallthru
      _
    %v119 = vld [vmem:[#allocation2] sm:$0xf]
    %v120 = vld [vmem:[#allocation2 + $0x4] sm:$0xf]
    %v121 = vld [vmem:[#allocation5] sm:$0xf]
    %v122 = vld [vmem:[#allocation5 + $0x4] sm:$0xf]
    %v123 = vld [vmem:[#allocation5 + $0x8] sm:$0xf]
    %v124 = vld [vmem:[#allocation5 + $0xc] sm:$0xf]
    %v127 = vunpack.c.l.b16 %v119
    %v128 = vunpack.c.l.b16 %v120
    %v129 = vpack.c.b16 %v128, %v127
    %v134 = vunpack.c.l.b16 %v121
    %v135 = vunpack.c.l.b16 %v122
    %v136 = vunpack.c.l.b16 %v123
    %v137 = vunpack.c.l.b16 %v124
    %v138 = vpack.c.b16 %v135, %v134
    %v139 = vpack.c.b16 %v137, %v136
    %vm142 = vcmask 261120
    %v144 = vsel %vm142, %v129, 0
    %146 = vmatpush.bf16.msra.mxu0 0
    %147 = vmatpush.bf16.msra.mxu0 0
    %148 = vmatpush.bf16.msra.mxu0 0
    %149 = vmatpush.bf16.msra.mxu0 0
    %150 = vmatpush.bf16.msra.mxu0 0
    %151 = vmatpush.bf16.msra.mxu0 0
    %152 = vmatpush.bf16.msra.mxu0 %v139
    %153 = vmatpush.bf16.msra.mxu0 %v138
    %154 = vmatmul.bf16.gmra.mxu0 %v144
    %v155 = vpop.f32.mrf.mxu0
    %v156 = vadd.f32 0.0, %v155
    %v157 = vpop.f32.mrf.mxu0
    %v158 = vadd.f32 0.0, %v157
    %159 = vdwg.mxu0
    %162 = vrot.lane.b32.xlu0 %v156, 96
    %v163 = vpop.permute.xlu0 %162
    %164 = vrot.lane.b32.xlu0 %v158, 96
    %v165 = vpop.permute.xlu0 %164
    %168 = vrot.lane.b32.xlu0 %v156, 32
    %v169 = vpop.permute.xlu0 %168
    %170 = vrot.lane.b32.xlu0 %v158, 32
    %v171 = vpop.permute.xlu0 %170
    %v174 = vsel %vm142, %v163, %v169
    %v175 = vsel %vm142, %v165, %v171
    %v176 = vld [vmem:[#allocation8] sm:$0xff]
    %v177 = vld [vmem:[#allocation8 + $0x8] sm:$0xff]
    %v178 = vmul.f32 %v156, %v176
    %v179 = vmul.f32 %v158, %v177
    %v180 = vld [vmem:[#allocation10] sm:$0xff]
    %v181 = vld [vmem:[#allocation10 + $0x8] sm:$0xff]
    %v182 = vmul.f32 %v174, %v180
    %v183 = vmul.f32 %v175, %v181
    %v184 = vadd.f32 %v178, %v182
    %v185 = vadd.f32 %v179, %v183
    %v186 = vld [vmem:[#allocation11] sm:$0xff]
    %v187 = vld [vmem:[#allocation11 + $0x8] sm:$0xff]
    %190 = vrot.lane.b32.xlu0 %v184, 100
    %v191 = vpop.permute.xlu0 %190
    %192 = vrot.lane.b32.xlu0 %v185, 100
    %v193 = vpop.permute.xlu0 %192
    %vm196 = vcmask 31744
    %v197 = vsel %vm196, %v184, %v191
    %v198 = vsel %vm196, %v185, %v193
    %199 = vrot.lane.b32.xlu0 %v184, 112
    %v200 = vpop.permute.xlu0 %199
    %201 = vrot.lane.b32.xlu0 %v185, 112
    %v202 = vpop.permute.xlu0 %201
    %205 = vrot.lane.b32.xlu0 %v184, 84
    %v206 = vpop.permute.xlu0 %205
    %207 = vrot.lane.b32.xlu0 %v185, 84
    %v208 = vpop.permute.xlu0 %207
    %v211 = vsel %vm196, %v200, %v206
    %v212 = vsel %vm196, %v202, %v208
    %vm213 = vcmask 64512
    %v215 = vsel %vm213, %v197, 0
    %v218 = vsel %vm213, %v198, 0
    %v221 = vsel %vm213, %v211, 0
    %v224 = vsel %vm213, %v212, 0
    %226 = vmatpush.xpose.msra.mxu0 0.0
    %227 = vmatpush.xpose.msra.mxu0 0.0
    %228 = vmatpush.xpose.msra.mxu0 0.0
    %229 = vmatpush.xpose.msra.mxu0 0.0
    %230 = vmatpush.xpose.msra.mxu0 0.0
    %231 = vmatpush.xpose.msra.mxu0 0.0
    %232 = vmatpush.xpose.msra.mxu0 0.0
    %233 = vmatpush.xpose.msra.mxu0 0.0
    %234 = vmatpush.xpose.msra.mxu0 0.0
    %235 = vmatpush.xpose.msra.mxu0 0.0
    %236 = vmatpush.xpose.msra.mxu0 0.0
    %237 = vmatpush.xpose.msra.mxu0 0.0
    %238 = vmatpush.xpose.msra.mxu0 0.0
    %239 = vmatpush.xpose.msra.mxu0 0.0
    %240 = vmatpush.xpose.msra.mxu0 %v224
    %241 = vmatpush.xpose.msra.mxu0 %v221
    %242 = vmatmul.f32.gmra.mxu0 %v215
    %v243 = vpop.f32.mrf.mxu0
    %v244 = vadd.f32 %v186, %v243
    %245 = vmatmul.f32.gmra.mxu0 %v218
    %v246 = vpop.f32.mrf.mxu0
    %v247 = vadd.f32 %v187, %v246
    %248 = vdwg.mxu0
    %vm249 = vcmask 130048
    %v250 = vsel %vm249, %v244, -inf
    %251 = vmax.xlane.f32.xlu0 %v250
    %v252 = vpop.xlane.xlu0 %251
    %v253 = vsel %vm249, %v247, -inf
    %254 = vmax.xlane.f32.xlu0 %v253
    %v255 = vpop.xlane.xlu0 %254
    %v256 = vsub.f32 %v244, %v252
    %v257 = vsub.f32 %v247, %v255
    %v258 = vmul.f32 %v256, 1.442695
    %v259 = vpow.pop %v258
    %v260 = vmul.f32 %v257, 1.442695
    %v261 = vpow.pop %v260
    %v262 = vsel %vm249, %v259, 0.0
    %263 = vadd.xlane.f32.xlu0 %v262
    %v264 = vpop.xlane.xlu0 %263
    %v265 = vsel %vm249, %v261, 0.0
    %266 = vadd.xlane.f32.xlu0 %v265
    %v267 = vpop.xlane.xlu0 %266
    %v268 = vpack.c.bf16 %v261, %v259
    %v269 = vpack.c.bf16 %v158, %v156
    %271 = vrot.lane.b32.xlu0 %v269, 64
    %v272 = vpop.permute.xlu0 %271
    %v275 = vsel %vm249, %v268, 0
    %277 = vmatpush.bf16.msra.mxu0 0
    %278 = vmatpush.bf16.msra.mxu0 0
    %279 = vmatpush.bf16.msra.mxu0 0
    %280 = vmatpush.bf16.msra.mxu0 0
    %281 = vmatpush.bf16.msra.mxu0 0
    %282 = vmatpush.bf16.msra.mxu0 0
    %283 = vmatpush.bf16.msra.mxu0 0
    %284 = vmatpush.bf16.msra.mxu0 %v272
    %285 = vmatmul.bf16.gmra.mxu0 %v275
    %v286 = vpop.f32.mrf.mxu0
    %v287 = vadd.f32 0.0, %v286
    %v288 = vpop.f32.mrf.mxu0
    %v289 = vadd.f32 0.0, %v288
    %290 = vdwg.mxu0
    %291 = vrot.lane.b32.xlu0 %v184, 124
    %v292 = vpop.permute.xlu0 %291
    %293 = vrot.lane.b32.xlu0 %v185, 124
    %v294 = vpop.permute.xlu0 %293
    %297 = vrot.lane.b32.xlu0 %v184, 96
    %v298 = vpop.permute.xlu0 %297
    %299 = vrot.lane.b32.xlu0 %v185, 96
    %v300 = vpop.permute.xlu0 %299
    %v303 = vsel %vm196, %v292, %v298
    %v304 = vsel %vm196, %v294, %v300
    %305 = vrot.lane.b32.xlu0 %v184, 108
    %v306 = vpop.permute.xlu0 %305
    %307 = vrot.lane.b32.xlu0 %v185, 108
    %v308 = vpop.permute.xlu0 %307
    %311 = vrot.lane.b32.xlu0 %v184, 80
    %v312 = vpop.permute.xlu0 %311
    %313 = vrot.lane.b32.xlu0 %v185, 80
    %v314 = vpop.permute.xlu0 %313
    %v317 = vsel %vm196, %v306, %v312
    %v318 = vsel %vm196, %v308, %v314
    %v320 = vsel %vm213, %v303, 0
    %v323 = vsel %vm213, %v304, 0
    %v326 = vsel %vm213, %v317, 0
    %v329 = vsel %vm213, %v318, 0
    %331 = vmatpush.xpose.msra.mxu0 0.0
    %332 = vmatpush.xpose.msra.mxu0 0.0
    %333 = vmatpush.xpose.msra.mxu0 0.0
    %334 = vmatpush.xpose.msra.mxu0 0.0
    %335 = vmatpush.xpose.msra.mxu0 0.0
    %336 = vmatpush.xpose.msra.mxu0 0.0
    %337 = vmatpush.xpose.msra.mxu0 0.0
    %338 = vmatpush.xpose.msra.mxu0 0.0
    %339 = vmatpush.xpose.msra.mxu0 0.0
    %340 = vmatpush.xpose.msra.mxu0 0.0
    %341 = vmatpush.xpose.msra.mxu0 0.0
    %342 = vmatpush.xpose.msra.mxu0 0.0
    %343 = vmatpush.xpose.msra.mxu0 0.0
    %344 = vmatpush.xpose.msra.mxu0 0.0
    %345 = vmatpush.xpose.msra.mxu0 %v329
    %346 = vmatpush.xpose.msra.mxu0 %v326
    %347 = vmatmul.f32.gmra.mxu0 %v320
    %v348 = vpop.f32.mrf.mxu0
    %v349 = vadd.f32 %v186, %v348
    %350 = vmatmul.f32.gmra.mxu0 %v323
    %v351 = vpop.f32.mrf.mxu0
    %v352 = vadd.f32 %v187, %v351
    %353 = vdwg.mxu0
    %v354 = vsel %vm249, %v349, -inf
    %355 = vmax.xlane.f32.xlu0 %v354
    %v356 = vpop.xlane.xlu0 %355
    %v357 = vsel %vm249, %v352, -inf
    %358 = vmax.xlane.f32.xlu0 %v357
    %v359 = vpop.xlane.xlu0 %358
    %v360 = vsub.f32 %v349, %v356
    %v361 = vsub.f32 %v352, %v359
    %v362 = vmul.f32 %v360, 1.442695
    %v363 = vpow.pop %v362
    %v364 = vmul.f32 %v361, 1.442695
    %v365 = vpow.pop %v364
    %v366 = vsel %vm249, %v363, 0.0
    %367 = vadd.xlane.f32.xlu0 %v366
    %v368 = vpop.xlane.xlu0 %367
    %v369 = vsel %vm249, %v365, 0.0
    %370 = vadd.xlane.f32.xlu0 %v369
    %v371 = vpop.xlane.xlu0 %370
    %v372 = vpack.c.bf16 %v365, %v363
    %373 = vrot.lane.b32.xlu0 %v269, 56
    %v374 = vpop.permute.xlu0 %373
    %v377 = vsel %vm249, %v372, 0
    %379 = vmatpush.bf16.msra.mxu0 0
    %380 = vmatpush.bf16.msra.mxu0 0
    %381 = vmatpush.bf16.msra.mxu0 0
    %382 = vmatpush.bf16.msra.mxu0 0
    %383 = vmatpush.bf16.msra.mxu0 0
    %384 = vmatpush.bf16.msra.mxu0 0
    %385 = vmatpush.bf16.msra.mxu0 0
    %386 = vmatpush.bf16.msra.mxu0 %v374
    %387 = vmatmul.bf16.gmra.mxu0 %v377
    %v388 = vpop.f32.mrf.mxu0
    %v389 = vadd.f32 0.0, %v388
    %v390 = vpop.f32.mrf.mxu0
    %v391 = vadd.f32 0.0, %v390
    %392 = vdwg.mxu0
    %393 = vrot.lane.b32.xlu0 %v184, 120
    %v394 = vpop.permute.xlu0 %393
    %395 = vrot.lane.b32.xlu0 %v185, 120
    %v396 = vpop.permute.xlu0 %395
    %399 = vrot.lane.b32.xlu0 %v184, 92
    %v400 = vpop.permute.xlu0 %399
    %401 = vrot.lane.b32.xlu0 %v185, 92
    %v402 = vpop.permute.xlu0 %401
    %v405 = vsel %vm196, %v394, %v400
    %v406 = vsel %vm196, %v396, %v402
    %407 = vrot.lane.b32.xlu0 %v184, 104
    %v408 = vpop.permute.xlu0 %407
    %409 = vrot.lane.b32.xlu0 %v185, 104
    %v410 = vpop.permute.xlu0 %409
    %413 = vrot.lane.b32.xlu0 %v184, 76
    %v414 = vpop.permute.xlu0 %413
    %415 = vrot.lane.b32.xlu0 %v185, 76
    %v416 = vpop.permute.xlu0 %415
    %v419 = vsel %vm196, %v408, %v414
    %v420 = vsel %vm196, %v410, %v416
    %v422 = vsel %vm213, %v405, 0
    %v425 = vsel %vm213, %v406, 0
    %v428 = vsel %vm213, %v419, 0
    %v431 = vsel %vm213, %v420, 0
    %433 = vmatpush.xpose.msra.mxu0 0.0
    %434 = vmatpush.xpose.msra.mxu0 0.0
    %435 = vmatpush.xpose.msra.mxu0 0.0
    %436 = vmatpush.xpose.msra.mxu0 0.0
    %437 = vmatpush.xpose.msra.mxu0 0.0
    %438 = vmatpush.xpose.msra.mxu0 0.0
    %439 = vmatpush.xpose.msra.mxu0 0.0
    %440 = vmatpush.xpose.msra.mxu0 0.0
    %441 = vmatpush.xpose.msra.mxu0 0.0
    %442 = vmatpush.xpose.msra.mxu0 0.0
    %443 = vmatpush.xpose.msra.mxu0 0.0
    %444 = vmatpush.xpose.msra.mxu0 0.0
    %445 = vmatpush.xpose.msra.mxu0 0.0
    %446 = vmatpush.xpose.msra.mxu0 0.0
    %447 = vmatpush.xpose.msra.mxu0 %v431
    %448 = vmatpush.xpose.msra.mxu0 %v428
    %449 = vmatmul.f32.gmra.mxu0 %v422
    %v450 = vpop.f32.mrf.mxu0
    %v451 = vadd.f32 %v186, %v450
    %452 = vmatmul.f32.gmra.mxu0 %v425
    %v453 = vpop.f32.mrf.mxu0
    %v454 = vadd.f32 %v187, %v453
    %455 = vdwg.mxu0
    %v456 = vsel %vm249, %v451, -inf
    %457 = vmax.xlane.f32.xlu0 %v456
    %v458 = vpop.xlane.xlu0 %457
    %v459 = vsel %vm249, %v454, -inf
    %460 = vmax.xlane.f32.xlu0 %v459
    %v461 = vpop.xlane.xlu0 %460
    %v462 = vsub.f32 %v451, %v458
    %v463 = vsub.f32 %v454, %v461
    %v464 = vmul.f32 %v462, 1.442695
    %v465 = vpow.pop %v464
    %v466 = vmul.f32 %v463, 1.442695
    %v467 = vpow.pop %v466
    %v468 = vsel %vm249, %v465, 0.0
    %469 = vadd.xlane.f32.xlu0 %v468
    %v470 = vpop.xlane.xlu0 %469
    %v471 = vsel %vm249, %v467, 0.0
    %472 = vadd.xlane.f32.xlu0 %v471
    %v473 = vpop.xlane.xlu0 %472
    %v474 = vpack.c.bf16 %v467, %v465
    %475 = vrot.lane.b32.xlu0 %v269, 48
    %v476 = vpop.permute.xlu0 %475
    %v479 = vsel %vm249, %v474, 0
    %481 = vmatpush.bf16.msra.mxu0 0
    %482 = vmatpush.bf16.msra.mxu0 0
    %483 = vmatpush.bf16.msra.mxu0 0
    %484 = vmatpush.bf16.msra.mxu0 0
    %485 = vmatpush.bf16.msra.mxu0 0
    %486 = vmatpush.bf16.msra.mxu0 0
    %487 = vmatpush.bf16.msra.mxu0 0
    %488 = vmatpush.bf16.msra.mxu0 %v476
    %489 = vmatmul.bf16.gmra.mxu0 %v479
    %v490 = vpop.f32.mrf.mxu0
    %v491 = vadd.f32 0.0, %v490
    %v492 = vpop.f32.mrf.mxu0
    %v493 = vadd.f32 0.0, %v492
    %494 = vdwg.mxu0
    %495 = vrot.lane.b32.xlu0 %v184, 116
    %v496 = vpop.permute.xlu0 %495
    %497 = vrot.lane.b32.xlu0 %v185, 116
    %v498 = vpop.permute.xlu0 %497
    %501 = vrot.lane.b32.xlu0 %v184, 88
    %v502 = vpop.permute.xlu0 %501
    %503 = vrot.lane.b32.xlu0 %v185, 88
    %v504 = vpop.permute.xlu0 %503
    %v507 = vsel %vm196, %v496, %v502
    %v508 = vsel %vm196, %v498, %v504
    %509 = vrot.lane.b32.xlu0 %v184, 72
    %v510 = vpop.permute.xlu0 %509
    %511 = vrot.lane.b32.xlu0 %v185, 72
    %v512 = vpop.permute.xlu0 %511
    %v515 = vsel %vm196, %v191, %v510
    %v516 = vsel %vm196, %v193, %v512
    %v518 = vsel %vm213, %v507, 0
    %v521 = vsel %vm213, %v508, 0
    %v524 = vsel %vm213, %v515, 0
    %v527 = vsel %vm213, %v516, 0
    %529 = vmatpush.xpose.msra.mxu0 0.0
    %530 = vmatpush.xpose.msra.mxu0 0.0
    %531 = vmatpush.xpose.msra.mxu0 0.0
    %532 = vmatpush.xpose.msra.mxu0 0.0
    %533 = vmatpush.xpose.msra.mxu0 0.0
    %534 = vmatpush.xpose.msra.mxu0 0.0
    %535 = vmatpush.xpose.msra.mxu0 0.0
    %536 = vmatpush.xpose.msra.mxu0 0.0
    %537 = vmatpush.xpose.msra.mxu0 0.0
    %538 = vmatpush.xpose.msra.mxu0 0.0
    %539 = vmatpush.xpose.msra.mxu0 0.0
    %540 = vmatpush.xpose.msra.mxu0 0.0
    %541 = vmatpush.xpose.msra.mxu0 0.0
    %542 = vmatpush.xpose.msra.mxu0 0.0
    %543 = vmatpush.xpose.msra.mxu0 %v527
    %544 = vmatpush.xpose.msra.mxu0 %v524
    %545 = vmatmul.f32.gmra.mxu0 %v518
    %v546 = vpop.f32.mrf.mxu0
    %v547 = vadd.f32 %v186, %v546
    %548 = vmatmul.f32.gmra.mxu0 %v521
    %v549 = vpop.f32.mrf.mxu0
    %v550 = vadd.f32 %v187, %v549
    %551 = vdwg.mxu0
    %v552 = vsel %vm249, %v547, -inf
    %553 = vmax.xlane.f32.xlu0 %v552
    %v554 = vpop.xlane.xlu0 %553
    %v555 = vsel %vm249, %v550, -inf
    %556 = vmax.xlane.f32.xlu0 %v555
    %v557 = vpop.xlane.xlu0 %556
    %v558 = vsub.f32 %v547, %v554
    %v559 = vsub.f32 %v550, %v557
    %v560 = vmul.f32 %v558, 1.442695
    %v561 = vpow.pop %v560
    %v562 = vmul.f32 %v559, 1.442695
    %v563 = vpow.pop %v562
    %v564 = vsel %vm249, %v561, 0.0
    %565 = vadd.xlane.f32.xlu0 %v564
    %v566 = vpop.xlane.xlu0 %565
    %v567 = vsel %vm249, %v563, 0.0
    %568 = vadd.xlane.f32.xlu0 %v567
    %v569 = vpop.xlane.xlu0 %568
    %v570 = vpack.c.bf16 %v563, %v561
    %571 = vrot.lane.b32.xlu0 %v269, 40
    %v572 = vpop.permute.xlu0 %571
    %v575 = vsel %vm249, %v570, 0
    %577 = vmatpush.bf16.msra.mxu0 0
    %578 = vmatpush.bf16.msra.mxu0 0
    %579 = vmatpush.bf16.msra.mxu0 0
    %580 = vmatpush.bf16.msra.mxu0 0
    %581 = vmatpush.bf16.msra.mxu0 0
    %582 = vmatpush.bf16.msra.mxu0 0
    %583 = vmatpush.bf16.msra.mxu0 0
    %584 = vmatpush.bf16.msra.mxu0 %v572
    %585 = vmatmul.bf16.gmra.mxu0 %v575
    %v586 = vpop.f32.mrf.mxu0
    %v587 = vadd.f32 0.0, %v586
    %v588 = vpop.f32.mrf.mxu0
    %v589 = vadd.f32 0.0, %v588
    %590 = vdwg.mxu0
    %vm591 = vcmask 7168
    %v592 = vsel %vm591, %v264, %v368
    %v593 = vsel %vm591, %v267, %v371
    %vm594 = vcmask 15360
    %v595 = vsel %vm594, %v592, %v470
    %v596 = vsel %vm594, %v593, %v473
    %vm597 = vcmask 23552
    %v598 = vsel %vm597, %v595, %v566
    %v599 = vsel %vm597, %v596, %v569
    %v600 = vrcp.pop %v598
    %v601 = vrcp.pop %v599
    %v602 = vmul.f32 %v598, %v600
    %v603 = vmul.f32 %v599, %v601
    %v604 = vsub.f32 2.0, %v602
    %v605 = vsub.f32 2.0, %v603
    %v606 = vmul.f32 %v600, %v604
    %v607 = vmul.f32 %v601, %v605
    %609 = vset.pattern.permute.xlu0 0
    %610 = vperm.xlu0 %609, %v606
    %v611 = vpop.permute.xlu0 %610
    %614 = vset.pattern.permute.xlu0 0
    %615 = vperm.xlu0 %614, %v607
    %v616 = vpop.permute.xlu0 %615
    %v618 = vmul.f32 %v287, %v611
    %v619 = vmul.f32 %v289, %v616
    %620 = vset.pattern.permute.xlu0 1
    %621 = vperm.xlu0 %620, %v606
    %v622 = vpop.permute.xlu0 %621
    %624 = vset.pattern.permute.xlu0 1
    %625 = vperm.xlu0 %624, %v607
    %v626 = vpop.permute.xlu0 %625
    %v628 = vmul.f32 %v389, %v622
    %v629 = vmul.f32 %v391, %v626
    %630 = vset.pattern.permute.xlu0 2
    %631 = vperm.xlu0 %630, %v606
    %v632 = vpop.permute.xlu0 %631
    %634 = vset.pattern.permute.xlu0 2
    %635 = vperm.xlu0 %634, %v607
    %v636 = vpop.permute.xlu0 %635
    %v638 = vmul.f32 %v491, %v632
    %v639 = vmul.f32 %v493, %v636
    %640 = vset.pattern.permute.xlu0 3
    %641 = vperm.xlu0 %640, %v606
    %v642 = vpop.permute.xlu0 %641
    %644 = vset.pattern.permute.xlu0 3
    %645 = vperm.xlu0 %644, %v607
    %v646 = vpop.permute.xlu0 %645
    %v648 = vmul.f32 %v587, %v642
    %v649 = vmul.f32 %v589, %v646
    %652 = vrot.lane.b32.xlu0 %v628, 8
    %v653 = vpop.permute.xlu0 %652
    %654 = vrot.lane.b32.xlu0 %v629, 8
    %v655 = vpop.permute.xlu0 %654
    %660 = vrot.lane.b32.xlu0 %v638, 16
    %v661 = vpop.permute.xlu0 %660
    %662 = vrot.lane.b32.xlu0 %v639, 16
    %v663 = vpop.permute.xlu0 %662
    %668 = vrot.lane.b32.xlu0 %v648, 24
    %v669 = vpop.permute.xlu0 %668
    %670 = vrot.lane.b32.xlu0 %v649, 24
    %v671 = vpop.permute.xlu0 %670
    %v674 = vsel %vm213, %v618, %v653
    %v675 = vsel %vm213, %v619, %v655
    %v676 = vsel %vm249, %v674, %v661
    %v677 = vsel %vm249, %v675, %v663
    %vm678 = vcmask 195584
    %v679 = vsel %vm678, %v676, %v669
    %v680 = vsel %vm678, %v677, %v671
    %v681 = vpack.c.bf16 %v680, %v679
    %v682 = vld [vmem:[#allocation7] sm:$0xf]
    %v683 = vld [vmem:[#allocation7 + $0x4] sm:$0xf]
    %v684 = vld [vmem:[#allocation7 + $0x8] sm:$0xf]
    %v685 = vld [vmem:[#allocation7 + $0xc] sm:$0xf]
    %v690 = vunpack.c.l.b16 %v682
    %v691 = vunpack.c.l.b16 %v683
    %v692 = vunpack.c.l.b16 %v684
    %v693 = vunpack.c.l.b16 %v685
    %v694 = vpack.c.b16 %v691, %v690
    %v695 = vpack.c.b16 %v693, %v692
    %v699 = vsel %vm142, %v681, 0
    %701 = vmatpush.bf16.msra.mxu0 0
    %702 = vmatpush.bf16.msra.mxu0 0
    %703 = vmatpush.bf16.msra.mxu0 0
    %704 = vmatpush.bf16.msra.mxu0 0
    %705 = vmatpush.bf16.msra.mxu0 0
    %706 = vmatpush.bf16.msra.mxu0 0
    %707 = vmatpush.bf16.msra.mxu0 %v695
    %708 = vmatpush.bf16.msra.mxu0 %v694
    %709 = vmatmul.bf16.gmra.mxu0 %v699
    %v710 = vpop.f32.mrf.mxu0
    %v711 = vadd.f32 0.0, %v710
    %v712 = vpop.f32.mrf.mxu0
    %v713 = vadd.f32 0.0, %v712
    %714 = vdwg.mxu0
    %715 = vst [vmem:[#allocation13] sm:$0xff] %v711
    %716 = vst [vmem:[#allocation13 + $0x8] sm:$0xff] %v713
    // Predicated region
    $region50: #{tpu_custom_call.1} parent=1 // pred_check
      _
    $region51: #{tpu_custom_call.1} parent=1 // pred_check_branch
      %718 = sbr.rel (0) target = $region53
    $region52: #{tpu_custom_call.1} parent=1 // pred_region
      %720 = vsyncadd [#allocation4], 0
      %s721 = sshll.u32 [#allocation13], 4
      %s722 = int_to_ptr.vmem [resolvable:$true] %s721
      %s723 = sshll.u32 %s6, 4
      %s724 = int_to_ptr.hbm [resolvable:$true] %s723
      %729 = dma.vmem_to_hbm [thread:$0]  %s722, 256, %s724, [#allocation4], 128, 128, 8
    $region53: #{tpu_custom_call.1} parent=1 // pred_fallthru
      _
    // Predicated region
    $region54: #{tpu_custom_call.1} parent=1 // pred_check
      _
    $region55: #{tpu_custom_call.1} parent=1 // pred_check_branch
      %731 = sbr.rel (0) target = $region57
    $region56: #{tpu_custom_call.1} parent=1 // pred_region
      %733 = dma.done [#allocation4], 256
    $region57: #{tpu_custom_call.1} parent=1 // pred_fallthru
      _
    %734 = vsyncpa [#allocation3], 1
    %735 = vsyncpa [#allocation6], 1
    %736 = vsyncpa [#allocation9], 1
    %737 = vsyncpa [#allocation12], 1
    %738 = vsyncpa [#allocation4], 1

</llo_original>
